<compile_context>
chip_gen: v7x
topology: tpu7x:2x2x1
jax: 0.10.0
libtpu: 0.0.40
codegen_flags: <defaults>
</compile_context>

<pallas_src>
import jax
import jax.numpy as jnp
from jax.experimental import pallas as pl
from jax.experimental.pallas import tpu as pltpu


def net_kernel(p_ref, w_ref, b_ref, o_ref):
    # p_ref : (49, TILE_N)  pooled features, samples on lanes
    # w_ref : (10, 49)      fc1 weight (tiny, resident)
    # b_ref : (10, 1)       fc1 bias (broadcasts over the lane/sample axis)
    # o_ref : (10, TILE_N)  log-softmax output (classes on sublanes, samples on lanes)
    logits = jnp.dot(w_ref[...], p_ref[...],
                     preferred_element_type=jnp.float32) + b_ref[...]

    # F.log_softmax over the class axis (axis 0 in this layout), numerically stable.
    m = jnp.max(logits, axis=0, keepdims=True)            # (1, TILE_N)
    z = logits - m
    lse = jnp.log(jnp.sum(jnp.exp(z), axis=0, keepdims=True))
    o_ref[...] = z - lse


def _choose_tiling(n):
    """Pick (lane tile, padded batch, grid steps) for a batch of size n."""
    n_lane = pl.cdiv(n, 128) * 128
    # Target ~4096-lane tiles to amortize per-step overhead; force >=2 grid
    # steps when there is enough batch so both v7x TensorCores get a share.
    steps = max(1, pl.cdiv(n_lane, 4096))
    if n_lane >= 256:
        steps = max(steps, 2)
    tile = pl.cdiv(pl.cdiv(n_lane, steps), 128) * 128
    n_pad = steps * tile
    return tile, n_pad, steps


def net_forward(x_nchw, w, b):
    """x_nchw: (N, 1, 28, 28) f32; w: (10, 49) f32; b: (10,) f32 -> (N, 10) f32."""
    n = x_nchw.shape[0]
    tile_n, n_pad, steps = _choose_tiling(n)

    # max_pool2d(x, 4) in the wrapper: a single read of the full input, 16x
    # shrink, then a tiny (N,49)->(49,N) transpose puts the batch on lanes.
    pooled = x_nchw.astype(jnp.float32).reshape(n, 7, 4, 7, 4).max(axis=(2, 4))
    pooled_t = jnp.transpose(pooled.reshape(n, 49))        # (49, N)
    if n_pad != n:
        # Padded columns only ever see the bias -> finite log-softmax, sliced off below.
        pooled_t = jnp.pad(pooled_t, ((0, 0), (0, n_pad - n)))

    w2 = w.astype(jnp.float32)                             # (10, 49)
    b2 = b.reshape(10, 1).astype(jnp.float32)              # (10, 1)

    out_t = pl.pallas_call(
        net_kernel,
        out_shape=jax.ShapeDtypeStruct((10, n_pad), jnp.float32),
        grid_spec=pltpu.PrefetchScalarGridSpec(
            num_scalar_prefetch=0,
            grid=(steps,),
            in_specs=[
                pl.BlockSpec((49, tile_n), lambda i: (0, i)),
                pl.BlockSpec((10, 49), lambda i: (0, 0)),
                pl.BlockSpec((10, 1), lambda i: (0, 0)),
            ],
            out_specs=pl.BlockSpec((10, tile_n), lambda i: (0, i)),
        ),
        compiler_params=pltpu.CompilerParams(
            dimension_semantics=("parallel",)),
    )(pooled_t, w2, b2)

    # (10, n_pad) -> (N, 10); output is tiny so this transpose is negligible.
    return jnp.transpose(out_t[:, :n])


def net_forward_ref(x_nchw, w, b):
    """Pure-JAX reference of the PyTorch forward, for verification."""
    n = x_nchw.shape[0]
    p = x_nchw.reshape(n, 7, 4, 7, 4).max(axis=(2, 4)).reshape(n, 49)
    logits = p @ w.T + b
    return jax.nn.log_softmax(logits, axis=-1)


if __name__ == "__main__":
    key = jax.random.PRNGKey(0)
    kx, kw, kb = jax.random.split(key, 3)

    # Deterministic synthetic parameters (nn.Linear(49, 10) shapes).
    bound = 1.0 / (49.0 ** 0.5)
    w = jax.random.uniform(kw, (10, 49), jnp.float32, minval=-bound, maxval=bound)
    b = jax.random.uniform(kb, (10,), jnp.float32, minval=-bound, maxval=bound)

    # Small batch; spatial 28x28 is dictated by the forward (pool/4 -> 7x7 = 49).
    x = jax.random.normal(kx, (2, 1, 28, 28), jnp.float32)

    out = net_forward(x, w, b)
    out = jax.block_until_ready(out)

    ref = net_forward_ref(x, w, b)
    assert out.shape == (2, 10)
    assert jnp.allclose(out, ref, atol=1e-4, rtol=1e-4), "mismatch vs reference"

    print("KERNEL_OK")
</pallas_src>

<mosaic_0001>
module attributes {stable_mosaic.version = 11 : i64} {
  func.func @net_kernel(%arg0: i32, %arg1: memref<49x128xf32, #tpu.memory_space<vmem>>, %arg2: memref<10x49xf32, #tpu.memory_space<vmem>>, %arg3: memref<10x1xf32, #tpu.memory_space<vmem>>, %arg4: memref<10x128xf32, #tpu.memory_space<vmem>>) attributes {dimension_semantics = [#tpu.dimension_semantics<parallel>], iteration_bounds = array<i64: 1>, scalar_prefetch = 0 : i64, scratch_operands = 0 : i64, tpu.core_type = #tpu.core_type<tc>, window_params = [{transform_indices = @transform_0, window_bounds = array<i64: 49, 128>}, {pipeline_mode = #tpu.pipeline_mode<synchronous>, transform_indices = @transform_1, window_bounds = array<i64: 10, 49>}, {pipeline_mode = #tpu.pipeline_mode<synchronous>, transform_indices = @transform_2, window_bounds = array<i64: 10, 1>}, {transform_indices = @transform_3, window_bounds = array<i64: 10, 128>}]} {
    %c0 = arith.constant 0 : index
    %c0_0 = arith.constant 0 : index
    %0 = vector.load %arg2[%c0, %c0_0] : memref<10x49xf32, #tpu.memory_space<vmem>>, vector<10x49xf32>
    %c0_1 = arith.constant 0 : index
    %c0_2 = arith.constant 0 : index
    %1 = vector.load %arg1[%c0_1, %c0_2] : memref<49x128xf32, #tpu.memory_space<vmem>>, vector<49x128xf32>
    %cst = arith.constant dense<0.000000e+00> : vector<10x128xf32>
    %2 = tpu.matmul %0, %1, %cst {dimension_numbers = #tpu.dot_dimension_numbers<[1], [0], [0], [1], [0, 0, 1, 1], [], []>} : vector<10x49xf32>, vector<49x128xf32>, vector<10x128xf32> -> vector<10x128xf32>
    %c0_3 = arith.constant 0 : index
    %c0_4 = arith.constant 0 : index
    %3 = vector.load %arg3[%c0_3, %c0_4] : memref<10x1xf32, #tpu.memory_space<vmem>>, vector<10x1xf32>
    %4 = vector.broadcast %3 : vector<10x1xf32> to vector<10x128xf32>
    %5 = arith.addf %2, %4 : vector<10x128xf32>
    %cst_5 = arith.constant dense<0xFF800000> : vector<128xf32>
    %6 = vector.multi_reduction <maximumf>, %5, %cst_5 [0] : vector<10x128xf32> to vector<128xf32>
    %7 = vector.shape_cast %6 : vector<128xf32> to vector<1x128xf32>
    %8 = vector.broadcast %7 : vector<1x128xf32> to vector<10x128xf32>
    %9 = arith.subf %5, %8 : vector<10x128xf32>
    %10 = math.exp %9 : vector<10x128xf32>
    %cst_6 = arith.constant dense<0.000000e+00> : vector<128xf32>
    %11 = vector.multi_reduction <add>, %10, %cst_6 [0] : vector<10x128xf32> to vector<128xf32>
    %12 = vector.shape_cast %11 : vector<128xf32> to vector<1x128xf32>
    %13 = math.log %12 : vector<1x128xf32>
    %14 = vector.broadcast %13 : vector<1x128xf32> to vector<10x128xf32>
    %15 = arith.subf %9, %14 : vector<10x128xf32>
    %c0_7 = arith.constant 0 : index
    %c0_8 = arith.constant 0 : index
    %16 = vector.load %arg4[%c0_7, %c0_8] : memref<10x128xf32, #tpu.memory_space<vmem>>, vector<10x128xf32>
    tpu.vector_store %arg4[%c0_7, %c0_8], %15 {strides = array<i32>} : memref<10x128xf32, #tpu.memory_space<vmem>>, vector<10x128xf32>,
    return
  }
  func.func @transform_0(%arg0: i32) -> (i32, i32) {
    %c0_i32 = arith.constant 0 : i32
    %c0_i32_0 = arith.constant 0 : i32
    return %c0_i32, %arg0 : i32, i32
  }
  func.func @transform_1(%arg0: i32) -> (i32, i32) {
    %c0_i32 = arith.constant 0 : i32
    %c0_i32_0 = arith.constant 0 : i32
    %c0_i32_1 = arith.constant 0 : i32
    return %c0_i32, %c0_i32_0 : i32, i32
  }
  func.func @transform_2(%arg0: i32) -> (i32, i32) {
    %c0_i32 = arith.constant 0 : i32
    %c0_i32_0 = arith.constant 0 : i32
    %c0_i32_1 = arith.constant 0 : i32
    return %c0_i32, %c0_i32_0 : i32, i32
  }
  func.func @transform_3(%arg0: i32) -> (i32, i32) {
    %c0_i32 = arith.constant 0 : i32
    %c0_i32_0 = arith.constant 0 : i32
    return %c0_i32, %arg0 : i32, i32
  }
}

</mosaic_0001>

<llo_original>
// kernel: tpu_custom_call.1
$region0: #{tpu_custom_call.1}
  #allocation0 [shape = 'u32[]', space=smem, size = 0x4, offset = 0x4, fixed_abs, tag = 'smem constant byte address 0x4 - core index']
  #allocation1 [shape = 'u32[144,128]{1,0:T(1,128)}', space=vmem, size = 0x12000, scoped, tag = 'internal scratch']
  %s0 = inlined_call_operand.hbm [shape: f32[49,128], index: 0, kind: input, shape index: {}]
  %s1 = inlined_call_operand.vmem [shape: f32[10,49], index: 1, kind: input, shape index: {}]
  %s2 = inlined_call_operand.vmem [shape: f32[10,1], index: 2, kind: input, shape index: {}]
  %s3 = inlined_call_operand.hbm [shape: f32[10,128], index: 3, kind: output, shape index: {}]
  %s4 = sld [smem:[#allocation0]]
  $region26: #{tpu_custom_call.1} parent=0
    _
  %s6 = ssub.s32 1, %s4
  %s7 = scalar_select 0, %s6, %s4
  $region1: #{tpu_custom_call.1} parent=0
    #allocation2 [shape = 'u8[28672]{0}', space=vmem, size = 0x7000, scoped, tag = 'input window, operand 0, single buffered']
    #allocation3 [shape = 's32[1]{0}', space=sflag, size = 0x4, scoped, tag = 'scoped memory for tpu_custom_call.1']
    #allocation4 [shape = 's32[1]{0}', space=sflag, size = 0x4, scoped, tag = 'scoped memory for tpu_custom_call.1']
    #allocation5 [shape = 'u8[8192]{0}', space=vmem, size = 0x2000, scoped, tag = 'output window, operand 0, single buffered']
    %8 = vsyncpa [#allocation3], 0
    %9 = vsyncpa [#allocation4], 0
    // Predicated region
    $region2: #{tpu_custom_call.1} parent=1 // pred_check
      _
    $region3: #{tpu_custom_call.1} parent=1 // pred_check_branch
      %11 = sbr.rel (0) target = $region5
    $region4: #{tpu_custom_call.1} parent=1 // pred_region
      %s13 = ssub.s32 896, 896
      %14 = vsyncadd [#allocation3], %s13
      %s15 = sshll.u32 [#allocation2], 4
      %s16 = int_to_ptr.vmem [resolvable:$true] %s15
      %21 = dma.hbm_to_vmem [thread:$0]  %s0, 896, %s16, [#allocation3], 128, 128, 8
    $region5: #{tpu_custom_call.1} parent=1 // pred_fallthru
      _
    // Predicated region
    $region6: #{tpu_custom_call.1} parent=1 // pred_check
      _
    $region7: #{tpu_custom_call.1} parent=1 // pred_check_branch
      %23 = sbr.rel (0) target = $region9
    $region8: #{tpu_custom_call.1} parent=1 // pred_region
      _
    $region9: #{tpu_custom_call.1} parent=1 // pred_fallthru
      _
    // Predicated region
    $region10: #{tpu_custom_call.1} parent=1 // pred_check
      _
    $region11: #{tpu_custom_call.1} parent=1 // pred_check_branch
      %25 = sbr.rel (0) target = $region13
    $region12: #{tpu_custom_call.1} parent=1 // pred_region
      _
    $region13: #{tpu_custom_call.1} parent=1 // pred_fallthru
      _
    // Predicated region
    $region14: #{tpu_custom_call.1} parent=1 // pred_check
      _
    $region15: #{tpu_custom_call.1} parent=1 // pred_check_branch
      %27 = sbr.rel (0) target = $region17
    $region16: #{tpu_custom_call.1} parent=1 // pred_region
      %28 = dma.done [#allocation3], 896
    $region17: #{tpu_custom_call.1} parent=1 // pred_fallthru
      _
    %v29 = vld [vmem:[%s1] sm:$0xff]
    %v30 = vld [vmem:[%s1 + $0x8] sm:$0x3]
    %v31 = vld [vmem:[#allocation2] sm:$0xff]
    %v32 = vld [vmem:[#allocation2 + $0x8] sm:$0xff]
    %v33 = vld [vmem:[#allocation2 + $0x10] sm:$0xff]
    %v34 = vld [vmem:[#allocation2 + $0x18] sm:$0xff]
    %v35 = vld [vmem:[#allocation2 + $0x20] sm:$0xff]
    %v36 = vld [vmem:[#allocation2 + $0x28] sm:$0xff]
    %v37 = vld [vmem:[#allocation2 + $0x30] sm:$0x1]
    %v38 = vld [vmem:[%s2] sm:$0xff]
    %v39 = vld [vmem:[%s2 + $0x8] sm:$0x3]
    %41 = vset.pattern.permute.xlu0 0
    %42 = vperm.xlu0 %41, %v38
    %v43 = vpop.permute.xlu0 %42
    %46 = vset.pattern.permute.xlu0 0
    %47 = vperm.xlu0 %46, %v39
    %v48 = vpop.permute.xlu0 %47
    %vm50 = vcmask 400384
    %v52 = vsel %vm50, %v29, 0
    %v55 = vsel %vm50, %v30, 0
    %vm57 = vcmask 1040384
    %v59 = vsel %vm57, %v37, 0
    %61 = vmatprep.subr.mxu0 0.0
    %62 = vmatpush1.msra.mxu0 %v31
    %63 = vmatprep.subr.mxu0 0.0
    %64 = vmatpush1.msra.mxu0 %v32
    %65 = vmatprep.subr.mxu0 0.0
    %66 = vmatpush1.msra.mxu0 %v33
    %67 = vmatprep.subr.mxu0 0.0
    %68 = vmatpush1.msra.mxu0 %v34
    %69 = vmatprep.subr.mxu0 0.0
    %70 = vmatpush1.msra.mxu0 %v35
    %71 = vmatprep.subr.mxu0 0.0
    %72 = vmatpush1.msra.mxu0 %v36
    %73 = vmatprep.subr.mxu0 0.0
    %74 = vmatpush1.msra.mxu0 %v59
    %75 = vmatprep.subr.mxu0 0.0
    %76 = vmatpush1.msra.mxu0 0.0
    %77 = vmatprep.subr.mxu0 0.0
    %78 = vmatpush1.msra.mxu0 0.0
    %79 = vmatprep.subr.mxu0 0.0
    %80 = vmatpush1.msra.mxu0 0.0
    %81 = vmatprep.subr.mxu0 0.0
    %82 = vmatpush1.msra.mxu0 0.0
    %83 = vmatprep.subr.mxu0 0.0
    %84 = vmatpush1.msra.mxu0 0.0
    %85 = vmatprep.subr.mxu0 0.0
    %86 = vmatpush1.msra.mxu0 0.0
    %87 = vmatprep.subr.mxu0 0.0
    %88 = vmatpush1.msra.mxu0 0.0
    %89 = vmatprep.subr.mxu0 0.0
    %90 = vmatpush1.msra.mxu0 0.0
    %91 = vmatprep.subr.mxu0 0.0
    %92 = vmatpush1.msra.mxu0 0.0
    %93 = vmatprep.subr.mxu0 0.0
    %94 = vmatpush1.msra.mxu0 0.0
    %95 = vmatprep.subr.mxu0 0.0
    %96 = vmatpush1.msra.mxu0 0.0
    %97 = vmatprep.subr.mxu0 0.0
    %98 = vmatpush1.msra.mxu0 0.0
    %99 = vmatprep.subr.mxu0 0.0
    %100 = vmatpush1.msra.mxu0 0.0
    %101 = vmatprep.subr.mxu0 0.0
    %102 = vmatpush1.msra.mxu0 0.0
    %103 = vmatprep.subr.mxu0 0.0
    %104 = vmatpush1.msra.mxu0 0.0
    %105 = vmatprep.subr.mxu0 0.0
    %106 = vmatpush1.msra.mxu0 0.0
    %107 = vmatprep.subr.mxu0 0.0
    %108 = vmatpush1.msra.mxu0 0.0
    %109 = vmatprep.subr.mxu0 0.0
    %110 = vmatpush1.msra.mxu0 0.0
    %111 = vmatprep.subr.mxu0 0.0
    %112 = vmatpush1.msra.mxu0 0.0
    %113 = vmatprep.subr.mxu0 0.0
    %114 = vmatpush1.msra.mxu0 0.0
    %115 = vmatprep.subr.mxu0 0.0
    %116 = vmatpush1.msra.mxu0 0.0
    %117 = vmatprep.subr.mxu0 0.0
    %118 = vmatpush1.msra.mxu0 0.0
    %119 = vmatprep.subr.mxu0 0.0
    %120 = vmatpush1.msra.mxu0 0.0
    %121 = vmatprep.subr.mxu0 0.0
    %122 = vmatpush1.msra.mxu0 0.0
    %123 = vmatprep.subr.mxu0 0.0
    %124 = vmatpush1.msra.mxu0 0.0
    %125 = vmatprep.mubr.f32.mxu0 0.0
    %126 = vmatmul.mubr.f32.gmra.mrb[0].mxu0 %v52
    %v127 = vpop.f32.mrb[0].mxu0
    %v128 = vadd.f32 %v43, %v127
    %v129 = vpop.f32.mrb[0].mxu0
    %130 = vmatprep.mubr.f32.mxu0 0.0
    %131 = vmatmul.mubr.f32.gmra.mrb[0].mxu0 %v55
    %v132 = vpop.f32.mrb[0].mxu0
    %v133 = vadd.f32 %v48, %v132
    %v134 = vpop.f32.mrb[0].mxu0
    %135 = vdwg.mxu0
    %vm136 = vcmask 1041408
    %v137 = vsel %vm136, %v133, -inf
    %v138 = vmax.f32 %v128, %v137
    %v139 = vrot.slane %v138, 4
    %v140 = vmax.f32 %v138, %v139
    %v141 = vrot.slane %v140, 2
    %v142 = vmax.f32 %v140, %v141
    %v143 = vrot.slane %v142, 1
    %v144 = vmax.f32 %v142, %v143
    %v145 = vsub.f32 %v128, %v144
    %v146 = vsub.f32 %v133, %v144
    %v147 = vmul.f32 %v145, 1.442695
    %v148 = vpow.pop %v147
    %v149 = vmul.f32 %v146, 1.442695
    %v150 = vpow.pop %v149
    %v151 = vsel %vm136, %v150, 0.0
    %v152 = vadd.f32 %v148, %v151
    %v153 = vrot.slane %v152, 4
    %v154 = vadd.f32 %v152, %v153
    %v155 = vrot.slane %v154, 2
    %v156 = vadd.f32 %v154, %v155
    %v157 = vrot.slane %v156, 1
    %v158 = vadd.f32 %v156, %v157
    %v159 = vlog2.pop %v158
    %v160 = vmul.f32 %v159, 0.6931472
    %v161 = vsub.f32 %v145, %v160
    %v162 = vsub.f32 %v146, %v160
    %163 = vst [vmem:[#allocation5] sm:$0xff] %v161
    %164 = vst [vmem:[#allocation5 + $0x8] sm:$0x3] %v162
    // Predicated region
    $region18: #{tpu_custom_call.1} parent=1 // pred_check
      _
    $region19: #{tpu_custom_call.1} parent=1 // pred_check_branch
      %166 = sbr.rel (0) target = $region21
    $region20: #{tpu_custom_call.1} parent=1 // pred_region
      %s168 = ssub.s32 256, 256
      %169 = vsyncadd [#allocation4], %s168
      %s170 = sshll.u32 [#allocation5], 4
      %s171 = int_to_ptr.vmem [resolvable:$true] %s170
      %176 = dma.vmem_to_hbm [thread:$0]  %s171, 256, %s3, [#allocation4], 128, 128, 8
    $region21: #{tpu_custom_call.1} parent=1 // pred_fallthru
      _
    // Predicated region
    $region22: #{tpu_custom_call.1} parent=1 // pred_check
      _
    $region23: #{tpu_custom_call.1} parent=1 // pred_check_branch
      %178 = sbr.rel (0) target = $region25
    $region24: #{tpu_custom_call.1} parent=1 // pred_region
      %179 = dma.done [#allocation4], 256
    $region25: #{tpu_custom_call.1} parent=1 // pred_fallthru
      _
    %180 = vsyncpa [#allocation3], 1
    %181 = vsyncpa [#allocation4], 1

</llo_original>
